<compile_context>
chip_gen: v7x
topology: tpu7x:2x2x1
jax: 0.10.0
libtpu: 0.0.40
codegen_flags: <defaults>
</compile_context>

<pallas_src>
import functools

import jax
import jax.numpy as jnp
from jax import lax
from jax.experimental import pallas as pl
from jax.experimental.pallas import tpu as pltpu

EPS = 1e-5  # nn.LayerNorm default eps

# Per-step VMEM working-set target: double-buffered I/O + resident weights +
# f32 temporaries must stay under this so the pipeline never collapses on
# v7x (64 MiB physical) or v5e (16 MiB scoped default -> raised explicitly).
_VMEM_BUDGET = 40 << 20
_VMEM_LIMIT_CAP = 56 << 20   # keep the scoped limit below v7x's 64 MiB physical


def _round_up(a, b):
    return (a + b - 1) // b * b


def _cdiv(a, b):
    return (a + b - 1) // b


def ada_layernorm_kernel(x_ref, cond_ref, params_ref, w_ref, o_ref):
    # --- LayerNorm over the feature axis in f32 (biased variance + eps, torch).
    # Two-pass mean/var kept on purpose: kernel is HBM-bound for typical shapes,
    # so the one-pass E[x^2]-mu^2 trick buys nothing and risks cancellation.
    x = x_ref[...].astype(jnp.float32)                          # (TM, F)
    mean = jnp.mean(x, axis=-1, keepdims=True)
    var = jnp.mean((x - mean) ** 2, axis=-1, keepdims=True)
    xn = (x - mean) * lax.rsqrt(var + EPS)

    # Resident f32 params (rows): gamma, beta, 1 + b_scale, b_shift.
    # All splits are along the leading (sublane) axis -> lane-dense for any F.
    gamma = params_ref[0:1, :]
    beta = params_ref[1:2, :]
    bias_scale1 = params_ref[2:3, :]                            # 1 + b_scale
    bias_shift = params_ref[3:4, :]

    y = xn * gamma + beta

    # Conditional projections: cond goes to the MXU in its native dtype
    # (bf16 stays bf16), f32 accumulate. Two (TM,C)@(C,F) dots so there is no
    # lane-offset-F slicing of a (TM, 2F) projection anywhere.
    c = cond_ref[...]                                           # (TM, C)
    scale1 = jnp.dot(c, w_ref[0], preferred_element_type=jnp.float32) + bias_scale1
    shift = jnp.dot(c, w_ref[1], preferred_element_type=jnp.float32) + bias_shift

    o_ref[...] = (y * scale1 + shift).astype(o_ref.dtype)


def pack_ada_layernorm_params(gamma, beta, w_scale, b_scale, w_shift, b_shift,
                              mxu_dtype=None):
    """One-time packing of the resident operands (call once at model init).

    Returns:
      params: (4, F) f32 — rows: gamma, beta, 1 + b_scale, b_shift.
      w_pack: (2, C, F)  — stacked [W_scale^T, W_shift^T], cast to mxu_dtype
                           if given (e.g. bf16 for bf16 models).
    """
    params = jnp.stack([
        gamma.astype(jnp.float32),
        beta.astype(jnp.float32),
        b_scale.astype(jnp.float32) + 1.0,      # fold the "+1" into the bias
        b_shift.astype(jnp.float32),
    ])
    w_pack = jnp.stack([w_scale.T, w_shift.T])
    if mxu_dtype is not None:
        w_pack = w_pack.astype(mxu_dtype)
    return params, w_pack


def _vmem_bytes(tm, F, C, x_bytes, cond_bytes, out_bytes, w_bytes):
    stream = 2 * tm * (F * x_bytes + C * cond_bytes + F * out_bytes)   # dbl-buf
    resident = 2 * C * F * w_bytes + 4 * F * 4
    temps = 4 * tm * F * 4          # x_f32 / xn / scale1 / shift f32 temporaries
    return stream + resident + temps


@functools.partial(jax.jit, static_argnames=("tm",))
def ada_layernorm(x, cond, params, w_pack, tm=512):
    """x: (B, S, F), cond: (B, S, C); params/w_pack from pack_ada_layernorm_params."""
    B, S, F = x.shape
    C = cond.shape[-1]
    R = B * S

    x_b = x.dtype.itemsize
    c_b = cond.dtype.itemsize
    w_b = w_pack.dtype.itemsize

    # ---- Row-tile selection --------------------------------------------------
    # 1) Cap by the VMEM budget so double-buffering survives on every chip gen.
    per_row = 2 * (F * x_b + C * c_b + F * x_b) + 4 * F * 4
    fixed = 2 * C * F * w_b + 4 * F * 4
    if _VMEM_BUDGET > fixed + 8 * per_row:
        tm_vmem = ((_VMEM_BUDGET - fixed) // per_row) // 8 * 8
    else:
        tm_vmem = 8
    tm_cap = max(8, min(tm, tm_vmem, _round_up(R, 8)))

    # 2) Aim for >= 4 grid steps when R permits, so each of v7x's two
    #    TensorCores still gets >= 2 iterations of DMA/compute overlap after
    #    the megacore split (single-TC v5e/v6e just see more, smaller steps).
    steps = max(4, _cdiv(R, tm_cap))
    tm_eff = max(8, min(tm_cap, _round_up(_cdiv(R, steps), 8)))
    grid = (_cdiv(R, tm_eff),)

    need = _vmem_bytes(tm_eff, F, C, x_b, c_b, x_b, w_b)
    vmem_limit = max(32 << 20, min(int(need * 1.25) + (1 << 20), _VMEM_LIMIT_CAP))
    if need > vmem_limit:
        # Resident weights alone exceed the v7x-safe budget; raise the limit
        # and rely on v5e/v6e's 128 MiB physical VMEM.
        # TODO(synk): add a C-reduction grid axis (P3 accumulator) for very
        # large cond_dim*feat_dim so the weights need not stay fully resident.
        vmem_limit = need + (2 << 20)

    # No wrapper-side padding: grid = cdiv(R, tm_eff) and Pallas masks the
    # partial last block (garbage rows are computed row-wise but never stored),
    # saving two full HBM passes (pad + slice) on an HBM-bound kernel.
    x2 = x.reshape(R, F)
    c2 = cond.reshape(R, C)

    out = pl.pallas_call(
        ada_layernorm_kernel,
        out_shape=jax.ShapeDtypeStruct((R, F), x.dtype),
        grid_spec=pltpu.PrefetchScalarGridSpec(
            num_scalar_prefetch=0,
            grid=grid,
            in_specs=[
                pl.BlockSpec((tm_eff, F), lambda i: (i, 0)),     # x rows
                pl.BlockSpec((tm_eff, C), lambda i: (i, 0)),     # cond rows
                pl.BlockSpec((4, F), lambda i: (0, 0)),          # params (resident)
                pl.BlockSpec((2, C, F), lambda i: (0, 0, 0)),    # weights (resident)
            ],
            out_specs=pl.BlockSpec((tm_eff, F), lambda i: (i, 0)),
        ),
        compiler_params=pltpu.CompilerParams(
            dimension_semantics=("parallel",),
            vmem_limit_bytes=vmem_limit),
    )(x2, c2, params, w_pack)

    return out.reshape(B, S, F)


def reference(x, cond, gamma, beta, w_scale, b_scale, w_shift, b_shift):
    xf = x.astype(jnp.float32)
    mean = jnp.mean(xf, -1, keepdims=True)
    var = jnp.mean((xf - mean) ** 2, -1, keepdims=True)
    y = (xf - mean) / jnp.sqrt(var + EPS) * gamma + beta
    scale = cond.astype(jnp.float32) @ w_scale.T + b_scale
    shift = cond.astype(jnp.float32) @ w_shift.T + b_shift
    return (y * (1.0 + scale) + shift).astype(x.dtype)


if __name__ == "__main__":
    # S=7 -> R=14 rows: deliberately ragged to exercise the masked last block.
    B, S, F, C = 2, 7, 128, 64   # batch, seq, feat_dim, cond_dim

    key = jax.random.PRNGKey(0)
    kx, kc, kws, kbs, kwh, kbh, kg, kb = jax.random.split(key, 8)

    x = jax.random.normal(kx, (B, S, F), dtype=jnp.float32)
    cond = jax.random.normal(kc, (B, S, C), dtype=jnp.float32)

    # LayerNorm affine params (perturbed slightly to exercise the affine path).
    gamma = jnp.ones((F,), jnp.float32) + 0.01 * jax.random.normal(kg, (F,))
    beta = 0.01 * jax.random.normal(kb, (F,))

    # nn.Linear(cond_dim, feat_dim) weights: (F, C), biases: (F,)
    w_scale = 0.1 * jax.random.normal(kws, (F, C), dtype=jnp.float32)
    b_scale = 0.1 * jax.random.normal(kbs, (F,), dtype=jnp.float32)
    w_shift = 0.1 * jax.random.normal(kwh, (F, C), dtype=jnp.float32)
    b_shift = 0.1 * jax.random.normal(kbh, (F,), dtype=jnp.float32)

    # --- f32 path: exact (1e-4) vs the f32 reference --------------------------
    params, w_pack = pack_ada_layernorm_params(
        gamma, beta, w_scale, b_scale, w_shift, b_shift)          # packed ONCE
    out = jax.block_until_ready(ada_layernorm(x, cond, params, w_pack))
    ref = reference(x, cond, gamma, beta, w_scale, b_scale, w_shift, b_shift)
    assert out.shape == (B, S, F)
    assert jnp.allclose(out, ref, atol=1e-4, rtol=1e-4), "f32 mismatch vs reference"

    # --- bf16 path: bf16 I/O + bf16 MXU weights, f32 accumulation -------------
    params16, w_pack16 = pack_ada_layernorm_params(
        gamma, beta, w_scale, b_scale, w_shift, b_shift, mxu_dtype=jnp.bfloat16)
    x16 = x.astype(jnp.bfloat16)
    c16 = cond.astype(jnp.bfloat16)
    out16 = jax.block_until_ready(ada_layernorm(x16, c16, params16, w_pack16))
    ref16 = reference(x16, c16, gamma, beta, w_scale, b_scale, w_shift, b_shift)
    assert out16.dtype == jnp.bfloat16
    assert jnp.allclose(out16.astype(jnp.float32), ref16.astype(jnp.float32),
                        atol=5e-2, rtol=5e-2), "bf16 mismatch vs reference"

    print("KERNEL_OK")
</pallas_src>

<mosaic_0001>
module attributes {stable_mosaic.version = 11 : i64} {
  func.func @ada_layernorm_kernel(%arg0: i32, %arg1: memref<8x128xf32, #tpu.memory_space<vmem>>, %arg2: memref<8x64xf32, #tpu.memory_space<vmem>>, %arg3: memref<4x128xf32, #tpu.memory_space<vmem>>, %arg4: memref<2x64x128xf32, #tpu.memory_space<vmem>>, %arg5: memref<8x128xf32, #tpu.memory_space<vmem>>) attributes {dimension_semantics = [#tpu.dimension_semantics<parallel>], iteration_bounds = array<i64: 2>, scalar_prefetch = 0 : i64, scratch_operands = 0 : i64, tpu.core_type = #tpu.core_type<tc>, window_params = [{transform_indices = @transform_0, window_bounds = array<i64: 8, 128>}, {transform_indices = @transform_1, window_bounds = array<i64: 8, 64>}, {pipeline_mode = #tpu.pipeline_mode<synchronous>, transform_indices = @transform_2, window_bounds = array<i64: 4, 128>}, {pipeline_mode = #tpu.pipeline_mode<synchronous>, transform_indices = @transform_3, window_bounds = array<i64: 2, 64, 128>}, {transform_indices = @transform_4, window_bounds = array<i64: 8, 128>}]} {
    %c0 = arith.constant 0 : index
    %c0_0 = arith.constant 0 : index
    %0 = vector.load %arg1[%c0, %c0_0] : memref<8x128xf32, #tpu.memory_space<vmem>>, vector<8x128xf32>
    %cst = arith.constant dense<0.000000e+00> : vector<8xf32>
    %1 = vector.multi_reduction <add>, %0, %cst [1] : vector<8x128xf32> to vector<8xf32>
    %2 = vector.shape_cast %1 : vector<8xf32> to vector<8x1xf32>
    %cst_1 = arith.constant 1.280000e+02 : f32
    %3 = vector.broadcast %cst_1 : f32 to vector<8x1xf32>
    %4 = arith.divf %2, %3 : vector<8x1xf32>
    %5 = vector.broadcast %4 : vector<8x1xf32> to vector<8x128xf32>
    %6 = arith.subf %0, %5 : vector<8x128xf32>
    %7 = arith.mulf %6, %6 : vector<8x128xf32>
    %cst_2 = arith.constant dense<0.000000e+00> : vector<8xf32>
    %8 = vector.multi_reduction <add>, %7, %cst_2 [1] : vector<8x128xf32> to vector<8xf32>
    %9 = vector.shape_cast %8 : vector<8xf32> to vector<8x1xf32>
    %cst_3 = arith.constant 1.280000e+02 : f32
    %10 = vector.broadcast %cst_3 : f32 to vector<8x1xf32>
    %11 = arith.divf %9, %10 : vector<8x1xf32>
    %12 = vector.broadcast %4 : vector<8x1xf32> to vector<8x128xf32>
    %13 = arith.subf %0, %12 : vector<8x128xf32>
    %cst_4 = arith.constant 9.99999974E-6 : f32
    %14 = vector.broadcast %cst_4 : f32 to vector<8x1xf32>
    %15 = arith.addf %11, %14 : vector<8x1xf32>
    %16 = math.rsqrt %15 : vector<8x1xf32>
    %17 = vector.broadcast %16 : vector<8x1xf32> to vector<8x128xf32>
    %18 = arith.mulf %13, %17 : vector<8x128xf32>
    %c0_5 = arith.constant 0 : index
    %c0_6 = arith.constant 0 : index
    %19 = vector.load %arg3[%c0_5, %c0_6] : memref<4x128xf32, #tpu.memory_space<vmem>>, vector<1x128xf32>
    %c1 = arith.constant 1 : index
    %c0_7 = arith.constant 0 : index
    %20 = vector.load %arg3[%c1, %c0_7] : memref<4x128xf32, #tpu.memory_space<vmem>>, vector<1x128xf32>
    %c2 = arith.constant 2 : index
    %c0_8 = arith.constant 0 : index
    %21 = vector.load %arg3[%c2, %c0_8] : memref<4x128xf32, #tpu.memory_space<vmem>>, vector<1x128xf32>
    %c3 = arith.constant 3 : index
    %c0_9 = arith.constant 0 : index
    %22 = vector.load %arg3[%c3, %c0_9] : memref<4x128xf32, #tpu.memory_space<vmem>>, vector<1x128xf32>
    %23 = vector.broadcast %19 : vector<1x128xf32> to vector<8x128xf32>
    %24 = arith.mulf %18, %23 : vector<8x128xf32>
    %25 = vector.broadcast %20 : vector<1x128xf32> to vector<8x128xf32>
    %26 = arith.addf %24, %25 : vector<8x128xf32>
    %c0_10 = arith.constant 0 : index
    %c0_11 = arith.constant 0 : index
    %27 = vector.load %arg2[%c0_10, %c0_11] : memref<8x64xf32, #tpu.memory_space<vmem>>, vector<8x64xf32>
    %c0_12 = arith.constant 0 : index
    %c0_13 = arith.constant 0 : index
    %c0_14 = arith.constant 0 : index
    %28 = vector.load %arg4[%c0_12, %c0_13, %c0_14] : memref<2x64x128xf32, #tpu.memory_space<vmem>>, vector<1x64x128xf32>
    %29 = vector.shape_cast %28 : vector<1x64x128xf32> to vector<64x128xf32>
    %cst_15 = arith.constant dense<0.000000e+00> : vector<8x128xf32>
    %30 = tpu.matmul %27, %29, %cst_15 {dimension_numbers = #tpu.dot_dimension_numbers<[1], [0], [0], [1], [0, 0, 1, 1], [], []>} : vector<8x64xf32>, vector<64x128xf32>, vector<8x128xf32> -> vector<8x128xf32>
    %31 = vector.broadcast %21 : vector<1x128xf32> to vector<8x128xf32>
    %32 = arith.addf %30, %31 : vector<8x128xf32>
    %c1_16 = arith.constant 1 : index
    %c0_17 = arith.constant 0 : index
    %c0_18 = arith.constant 0 : index
    %33 = vector.load %arg4[%c1_16, %c0_17, %c0_18] : memref<2x64x128xf32, #tpu.memory_space<vmem>>, vector<1x64x128xf32>
    %34 = vector.shape_cast %33 : vector<1x64x128xf32> to vector<64x128xf32>
    %cst_19 = arith.constant dense<0.000000e+00> : vector<8x128xf32>
    %35 = tpu.matmul %27, %34, %cst_19 {dimension_numbers = #tpu.dot_dimension_numbers<[1], [0], [0], [1], [0, 0, 1, 1], [], []>} : vector<8x64xf32>, vector<64x128xf32>, vector<8x128xf32> -> vector<8x128xf32>
    %36 = vector.broadcast %22 : vector<1x128xf32> to vector<8x128xf32>
    %37 = arith.addf %35, %36 : vector<8x128xf32>
    %38 = arith.mulf %26, %32 : vector<8x128xf32>
    %39 = arith.addf %38, %37 : vector<8x128xf32>
    %c0_20 = arith.constant 0 : index
    %c0_21 = arith.constant 0 : index
    %40 = vector.load %arg5[%c0_20, %c0_21] : memref<8x128xf32, #tpu.memory_space<vmem>>, vector<8x128xf32>
    tpu.vector_store %arg5[%c0_20, %c0_21], %39 {strides = array<i32>} : memref<8x128xf32, #tpu.memory_space<vmem>>, vector<8x128xf32>,
    return
  }
  func.func @transform_0(%arg0: i32) -> (i32, i32) {
    %c0_i32 = arith.constant 0 : i32
    %c0_i32_0 = arith.constant 0 : i32
    return %arg0, %c0_i32 : i32, i32
  }
  func.func @transform_1(%arg0: i32) -> (i32, i32) {
    %c0_i32 = arith.constant 0 : i32
    %c0_i32_0 = arith.constant 0 : i32
    return %arg0, %c0_i32 : i32, i32
  }
  func.func @transform_2(%arg0: i32) -> (i32, i32) {
    %c0_i32 = arith.constant 0 : i32
    %c0_i32_0 = arith.constant 0 : i32
    %c0_i32_1 = arith.constant 0 : i32
    return %c0_i32, %c0_i32_0 : i32, i32
  }
  func.func @transform_3(%arg0: i32) -> (i32, i32, i32) {
    %c0_i32 = arith.constant 0 : i32
    %c0_i32_0 = arith.constant 0 : i32
    %c0_i32_1 = arith.constant 0 : i32
    %c0_i32_2 = arith.constant 0 : i32
    return %c0_i32, %c0_i32_0, %c0_i32_1 : i32, i32, i32
  }
  func.func @transform_4(%arg0: i32) -> (i32, i32) {
    %c0_i32 = arith.constant 0 : i32
    %c0_i32_0 = arith.constant 0 : i32
    return %arg0, %c0_i32 : i32, i32
  }
}

</mosaic_0001>

<llo_original>
// kernel: ada_layernorm.1
$region0: #{ada_layernorm.1}
  #allocation0 [shape = 'u32[]', space=smem, size = 0x4, offset = 0x4, fixed_abs, tag = 'smem constant byte address 0x4 - core index']
  #allocation1 [shape = 'u32[144,128]{1,0:T(1,128)}', space=vmem, size = 0x12000, scoped, tag = 'internal scratch']
  %s0 = inlined_call_operand.vmem [shape: f32[14,128], index: 0, kind: input, shape index: {}]
  %s1 = inlined_call_operand.vmem [shape: f32[14,64], index: 1, kind: input, shape index: {}]
  %s2 = inlined_call_operand.vmem [shape: f32[4,128], index: 2, kind: input, shape index: {}]
  %s3 = inlined_call_operand.vmem [shape: f32[2,64,128], index: 3, kind: input, shape index: {}]
  %s4 = inlined_call_operand.vmem [shape: f32[14,128], index: 4, kind: output, shape index: {}]
  %s5 = sld [smem:[#allocation0]]
  $region49: #{ada_layernorm.1} parent=0
    _
  %s7 = ssub.s32 1, %s5
  %s8 = scalar_select 0, %s7, %s5
  loop: start=0, step=1, limit=4
  $region2: #{ada_layernorm.1} parent=0 // loop_pre_header
    _
  $region3: #{ada_layernorm.1} parent=0 // loop_header
    %s10 = sphi 0, %s14
    %p11 = scmp.ge.s32.totalorder %s10, 4
    %s20 = sphi 0, %s22
    %s23 = sphi 0, %s20
    %s24 = sphi 0, %s23
    %s40 = sphi 0, %s24
    %s46 = sphi 0, %s48
    %s49 = sphi 0, %s46
    %s50 = sphi 0, %s49
    %s66 = sphi 0, %s50
    %s70 = sphi 0, %s70
    %s72 = sphi 0, %s70
    %s73 = sphi 0, %s72
    %s87 = sphi 0, %s73
    %s91 = sphi 0, %s91
    %s93 = sphi 0, %s91
    %s94 = sphi 0, %s93
    %s108 = sphi 0, %s94
    %s114 = sphi 0, %s116
    %s117 = sphi 0, %s114
    %s118 = sphi 0, %s117
    %s134 = sphi 0, %s118
  $region4: #{ada_layernorm.1} parent=0 // loop_header_branch
    %13 = sbr.rel (%p11) target = $region8
  $region5: #{ada_layernorm.1} parent=0 // loop_body
    %s15 = ssub.s32 %s10, 1
    %s16 = ssub.s32 %s10, 2
    %s17 = sadd.s32 %s10, 1
    %s18 = ssub.s32 %s10, %s17
    %p19 = scmp.eq.s32.totalorder %s18, 0
    %s21 = sadd.s32 %s20, 1
    %s22 = scalar_select %p19, %s20, %s21
    %p25 = pneg %p19
    %p26 = scmp.eq.s32.totalorder %s10, 1
    %p27 = por %p25, %p26
    %p28 = scmp.ne.s32.totalorder %s20, %s23
    %p29 = scmp.eq.s32.totalorder %s10, 0
    %p30 = por %p28, %p29
    %p31 = scmp.ne.s32.totalorder %s20, %s23
    %p32 = scmp.eq.s32.totalorder %s15, 1
    %p33 = por %p31, %p32
    %p34 = scmp.ne.s32.totalorder %s23, %s24
    %p35 = scmp.eq.s32.totalorder %s15, 0
    %p36 = por %p34, %p35
    %p37 = scmp.ne.s32.totalorder %s23, %s24
    %p38 = scmp.eq.s32.totalorder %s16, 1
    %p39 = por %p37, %p38
    %p41 = scmp.ne.s32.totalorder %s24, %s40
    %p42 = scmp.eq.s32.totalorder %s16, 0
    %p43 = por %p41, %p42
    %s44 = ssub.s32 %s10, %s17
    %p45 = scmp.eq.s32.totalorder %s44, 0
    %s47 = sadd.s32 %s46, 1
    %s48 = scalar_select %p45, %s46, %s47
    %p51 = pneg %p45
    %p52 = scmp.eq.s32.totalorder %s10, 1
    %p53 = por %p51, %p52
    %p54 = scmp.ne.s32.totalorder %s46, %s49
    %p55 = scmp.eq.s32.totalorder %s10, 0
    %p56 = por %p54, %p55
    %p57 = scmp.ne.s32.totalorder %s46, %s49
    %p58 = scmp.eq.s32.totalorder %s15, 1
    %p59 = por %p57, %p58
    %p60 = scmp.ne.s32.totalorder %s49, %s50
    %p61 = scmp.eq.s32.totalorder %s15, 0
    %p62 = por %p60, %p61
    %p63 = scmp.ne.s32.totalorder %s49, %s50
    %p64 = scmp.eq.s32.totalorder %s16, 1
    %p65 = por %p63, %p64
    %p67 = scmp.ne.s32.totalorder %s50, %s66
    %p68 = scmp.eq.s32.totalorder %s16, 0
    %p69 = por %p67, %p68
    %s71 = sadd.s32 %s70, 1
    %p74 = scmp.eq.s32.totalorder %s10, 1
    %p75 = scmp.ne.s32.totalorder %s70, %s72
    %p76 = scmp.eq.s32.totalorder %s10, 0
    %p77 = por %p75, %p76
    %p78 = scmp.ne.s32.totalorder %s70, %s72
    %p79 = scmp.eq.s32.totalorder %s15, 1
    %p80 = por %p78, %p79
    %p81 = scmp.ne.s32.totalorder %s72, %s73
    %p82 = scmp.eq.s32.totalorder %s15, 0
    %p83 = por %p81, %p82
    %p84 = scmp.ne.s32.totalorder %s72, %s73
    %p85 = scmp.eq.s32.totalorder %s16, 1
    %p86 = por %p84, %p85
    %p88 = scmp.ne.s32.totalorder %s73, %s87
    %p89 = scmp.eq.s32.totalorder %s16, 0
    %p90 = por %p88, %p89
    %s92 = sadd.s32 %s91, 1
    %p95 = scmp.eq.s32.totalorder %s10, 1
    %p96 = scmp.ne.s32.totalorder %s91, %s93
    %p97 = scmp.eq.s32.totalorder %s10, 0
    %p98 = por %p96, %p97
    %p99 = scmp.ne.s32.totalorder %s91, %s93
    %p100 = scmp.eq.s32.totalorder %s15, 1
    %p101 = por %p99, %p100
    %p102 = scmp.ne.s32.totalorder %s93, %s94
    %p103 = scmp.eq.s32.totalorder %s15, 0
    %p104 = por %p102, %p103
    %p105 = scmp.ne.s32.totalorder %s93, %s94
    %p106 = scmp.eq.s32.totalorder %s16, 1
    %p107 = por %p105, %p106
    %p109 = scmp.ne.s32.totalorder %s94, %s108
    %p110 = scmp.eq.s32.totalorder %s16, 0
    %p111 = por %p109, %p110
    %s112 = ssub.s32 %s10, %s17
    %p113 = scmp.eq.s32.totalorder %s112, 0
    %s115 = sadd.s32 %s114, 1
    %s116 = scalar_select %p113, %s114, %s115
    %p119 = pneg %p113
    %p120 = scmp.eq.s32.totalorder %s10, 1
    %p121 = por %p119, %p120
    %p122 = scmp.ne.s32.totalorder %s114, %s117
    %p123 = scmp.eq.s32.totalorder %s10, 0
    %p124 = por %p122, %p123
    %p125 = scmp.ne.s32.totalorder %s114, %s117
    %p126 = scmp.eq.s32.totalorder %s15, 1
    %p127 = por %p125, %p126
    %p128 = scmp.ne.s32.totalorder %s117, %s118
    %p129 = scmp.eq.s32.totalorder %s15, 0
    %p130 = por %p128, %p129
    %p131 = scmp.ne.s32.totalorder %s117, %s118
    %p132 = scmp.eq.s32.totalorder %s16, 1
    %p133 = por %p131, %p132
    %p135 = scmp.ne.s32.totalorder %s118, %s134
    %p136 = scmp.eq.s32.totalorder %s16, 0
    %p137 = por %p135, %p136
    %p138 = scmp.le.s32.totalorder 1, %s10
    %p139 = scmp.lt.s32.totalorder %s10, 3
    %p140 = pnand %p138, %p139
    %p141 = pneg %p140
    // Predicated region
    $region9: #{ada_layernorm.1} parent=5 // pred_check
      _
    $region10: #{ada_layernorm.1} parent=5 // pred_check_branch
      %143 = sbr.rel (%p140) target = $region12
    $region11: #{ada_layernorm.1} parent=5 // pred_region
      %s144 = ssub.s32 %s10, 1
      // Predicated region
      $region13: #{ada_layernorm.1} parent=11 // pred_check
        %p145 = pneg %p83
      $region14: #{ada_layernorm.1} parent=11 // pred_check_branch
        %147 = sbr.rel (%p145) target = $region16
      $region15: #{ada_layernorm.1} parent=11 // pred_region
        _
      $region16: #{ada_layernorm.1} parent=11 // pred_fallthru
        _
      // Predicated region
      $region17: #{ada_layernorm.1} parent=11 // pred_check
        %p148 = pneg %p104
      $region18: #{ada_layernorm.1} parent=11 // pred_check_branch
        %150 = sbr.rel (%p148) target = $region20
      $region19: #{ada_layernorm.1} parent=11 // pred_region
        _
      $region20: #{ada_layernorm.1} parent=11 // pred_fallthru
        _
    $region12: #{ada_layernorm.1} parent=5 // pred_fallthru
      _
    %p151 = scmp.lt.s32.totalorder %s10, 2
    // Predicated region
    $region21: #{ada_layernorm.1} parent=5 // pred_check
      %p152 = pneg %p151
    $region22: #{ada_layernorm.1} parent=5 // pred_check_branch
      %154 = sbr.rel (%p152) target = $region24
    $region23: #{ada_layernorm.1} parent=5 // pred_region
      // Predicated region
      $region25: #{ada_layernorm.1} parent=23 // pred_check
        %p155 = pneg %p30
      $region26: #{ada_layernorm.1} parent=23 // pred_check_branch
        %157 = sbr.rel (%p155) target = $region28
      $region27: #{ada_layernorm.1} parent=23 // pred_region
        %p158 = scmp.lt.s32.totalorder %s10, 1
        %s159 = scalar_select %p158, %s10, 1
        %s160 = smul.addr %s159, 8
        %s161 = scalar_lea.vmem %s0, %s160
      $region28: #{ada_layernorm.1} parent=23 // pred_fallthru
        _
      // Predicated region
      $region29: #{ada_layernorm.1} parent=23 // pred_check
        %p162 = pneg %p56
      $region30: #{ada_layernorm.1} parent=23 // pred_check_branch
        %164 = sbr.rel (%p162) target = $region32
      $region31: #{ada_layernorm.1} parent=23 // pred_region
        %p165 = scmp.lt.s32.totalorder %s10, 1
        %s166 = scalar_select %p165, %s10, 1
        %s167 = smul.addr %s166, 8
        %s168 = scalar_lea.vmem %s1, %s167
      $region32: #{ada_layernorm.1} parent=23 // pred_fallthru
        _
    $region24: #{ada_layernorm.1} parent=5 // pred_fallthru
      _
    %p169 = scmp.le.s32.totalorder 1, %s10
    %p170 = scmp.lt.s32.totalorder %s10, 3
    %p171 = pnand %p169, %p170
    %p172 = pneg %p171
    // Predicated region
    $region33: #{ada_layernorm.1} parent=5 // pred_check
      _
    $region34: #{ada_layernorm.1} parent=5 // pred_check_branch
      %174 = sbr.rel (%p171) target = $region36
    $region35: #{ada_layernorm.1} parent=5 // pred_region
      %s175 = ssub.s32 %s10, 1
      %p176 = scmp.lt.s32.totalorder %s15, 1
      %s177 = scalar_select %p176, %s15, 1
      %s178 = smul.addr %s177, 8
      %s179 = scalar_lea.vmem %s0, %s178
      %p180 = pneg %p36
      %p181 = pneg %p33
      %p182 = scmp.lt.s32.totalorder %s15, 1
      %s183 = scalar_select %p182, %s15, 1
      %s184 = smul.addr %s183, 8
      %s185 = scalar_lea.vmem %s1, %s184
      %p186 = pneg %p62
      %p187 = pneg %p59
      %p188 = pneg %p83
      %p189 = pneg %p80
      %p190 = pneg %p104
      %p191 = pneg %p101
      %p192 = pneg %p130
      %p193 = pneg %p127
      %p194 = scmp.lt.s32.totalorder %s15, 1
      %s195 = scalar_select %p194, %s15, 1
      %s196 = smul.addr %s195, 8
      %s197 = scalar_lea.vmem %s4, %s196
      %p198 = scmp.lt.s32.totalorder %s15, 1
      %s199 = scalar_select %p198, %s15, 1
      %s200 = smul.addr %s199, 8
      %s201 = scalar_lea.vmem %s0, %s200
      %p202 = scmp.lt.s32.totalorder %s15, 1
      %s203 = scalar_select %p202, %s15, 1
      %s204 = smul.addr %s203, 8
      %s205 = scalar_lea.vmem %s1, %s204
      %p206 = scmp.lt.s32.totalorder %s15, 1
      %s207 = scalar_select %p206, %s15, 1
      %s208 = smul.addr %s207, 8
      %s209 = scalar_lea.vmem %s4, %s208
      %v210 = vld [vmem:[%s201] sm:$0xff]
      %211 = vadd.xlane.f32.xlu0 %v210
      %v212 = vpop.xlane.xlu0 %211
      %v213 = vrcp.pop 128.0
      %v214 = vmul.f32 %v212, %v213
      %v215 = vsub.f32 %v210, %v214
      %v216 = vmul.f32 %v215, %v215
      %217 = vadd.xlane.f32.xlu0 %v216
      %v218 = vpop.xlane.xlu0 %217
      %v219 = vmul.f32 %v218, %v213
      %v220 = vadd.f32 %v219, 1e-05
      %v221 = vrsqrt.pop %v220
      %v222 = vmul.f32 %v215, %v221
      %v223 = vld [vmem:[%s2] sm:$0x1]
      %v224 = vld [vmem:[%s2 + $0x1] sm:$0x1]
      %v225 = vld [vmem:[%s2 + $0x2] sm:$0x1]
      %v226 = vld [vmem:[%s2 + $0x3] sm:$0x1]
      %v227 = vlaneseq
      %v228 = vshrl.u32 %v227, 7
      %v229 = vsub.s32 0, %v228
      %v230 = vrot.slane %v223, %v229
      %v231 = vmul.f32 %v222, %v230
      %v232 = vlaneseq
      %v233 = vshrl.u32 %v232, 7
      %v234 = vsub.s32 0, %v233
      %v235 = vrot.slane %v224, %v234
      %v236 = vadd.f32 %v231, %v235
      %v237 = vld [vmem:[%s205] sm:$0xff]
      %v238 = vld [vmem:[%s3] sm:$0xff]
      %v239 = vld [vmem:[%s3 + $0x8] sm:$0xff]
      %v240 = vld [vmem:[%s3 + $0x10] sm:$0xff]
      %v241 = vld [vmem:[%s3 + $0x18] sm:$0xff]
      %v242 = vld [vmem:[%s3 + $0x20] sm:$0xff]
      %v243 = vld [vmem:[%s3 + $0x28] sm:$0xff]
      %v244 = vld [vmem:[%s3 + $0x30] sm:$0xff]
      %v245 = vld [vmem:[%s3 + $0x38] sm:$0xff]
      %v246 = vlaneseq
      %v247 = vshrl.u32 %v246, 7
      %v248 = vsub.s32 0, %v247
      %v249 = vrot.slane %v225, %v248
      %vm250 = vcmask 523264
      %v252 = vsel %vm250, %v237, 0
      %254 = vmatprep.subr.mxu0 0.0
      %255 = vmatpush1.msra.mxu0 %v238
      %256 = vmatprep.subr.mxu0 0.0
      %257 = vmatpush1.msra.mxu0 %v239
      %258 = vmatprep.subr.mxu0 0.0
      %259 = vmatpush1.msra.mxu0 %v240
      %260 = vmatprep.subr.mxu0 0.0
      %261 = vmatpush1.msra.mxu0 %v241
      %262 = vmatprep.subr.mxu0 0.0
      %263 = vmatpush1.msra.mxu0 %v242
      %264 = vmatprep.subr.mxu0 0.0
      %265 = vmatpush1.msra.mxu0 %v243
      %266 = vmatprep.subr.mxu0 0.0
      %267 = vmatpush1.msra.mxu0 %v244
      %268 = vmatprep.subr.mxu0 0.0
      %269 = vmatpush1.msra.mxu0 %v245
      %270 = vmatprep.subr.mxu0 0.0
      %271 = vmatpush1.msra.mxu0 0.0
      %272 = vmatprep.subr.mxu0 0.0
      %273 = vmatpush1.msra.mxu0 0.0
      %274 = vmatprep.subr.mxu0 0.0
      %275 = vmatpush1.msra.mxu0 0.0
      %276 = vmatprep.subr.mxu0 0.0
      %277 = vmatpush1.msra.mxu0 0.0
      %278 = vmatprep.subr.mxu0 0.0
      %279 = vmatpush1.msra.mxu0 0.0
      %280 = vmatprep.subr.mxu0 0.0
      %281 = vmatpush1.msra.mxu0 0.0
      %282 = vmatprep.subr.mxu0 0.0
      %283 = vmatpush1.msra.mxu0 0.0
      %284 = vmatprep.subr.mxu0 0.0
      %285 = vmatpush1.msra.mxu0 0.0
      %286 = vmatprep.subr.mxu0 0.0
      %287 = vmatpush1.msra.mxu0 0.0
      %288 = vmatprep.subr.mxu0 0.0
      %289 = vmatpush1.msra.mxu0 0.0
      %290 = vmatprep.subr.mxu0 0.0
      %291 = vmatpush1.msra.mxu0 0.0
      %292 = vmatprep.subr.mxu0 0.0
      %293 = vmatpush1.msra.mxu0 0.0
      %294 = vmatprep.subr.mxu0 0.0
      %295 = vmatpush1.msra.mxu0 0.0
      %296 = vmatprep.subr.mxu0 0.0
      %297 = vmatpush1.msra.mxu0 0.0
      %298 = vmatprep.subr.mxu0 0.0
      %299 = vmatpush1.msra.mxu0 0.0
      %300 = vmatprep.subr.mxu0 0.0
      %301 = vmatpush1.msra.mxu0 0.0
      %302 = vmatprep.subr.mxu0 0.0
      %303 = vmatpush1.msra.mxu0 0.0
      %304 = vmatprep.subr.mxu0 0.0
      %305 = vmatpush1.msra.mxu0 0.0
      %306 = vmatprep.subr.mxu0 0.0
      %307 = vmatpush1.msra.mxu0 0.0
      %308 = vmatprep.subr.mxu0 0.0
      %309 = vmatpush1.msra.mxu0 0.0
      %310 = vmatprep.subr.mxu0 0.0
      %311 = vmatpush1.msra.mxu0 0.0
      %312 = vmatprep.subr.mxu0 0.0
      %313 = vmatpush1.msra.mxu0 0.0
      %314 = vmatprep.subr.mxu0 0.0
      %315 = vmatpush1.msra.mxu0 0.0
      %316 = vmatprep.subr.mxu0 0.0
      %317 = vmatpush1.msra.mxu0 0.0
      %318 = vmatprep.mubr.f32.mxu0 0.0
      %319 = vmatmul.mubr.f32.gmra.mrb[0].mxu0 %v252
      %v320 = vpop.f32.mrb[0].mxu0
      %v321 = vadd.f32 %v249, %v320
      %v322 = vpop.f32.mrb[0].mxu0
      %323 = vdwg.mxu0
      %s324 = scalar_lea.vmem %s3, 64
      %v325 = vld [vmem:[%s324] sm:$0xff]
      %v326 = vld [vmem:[%s324 + $0x8] sm:$0xff]
      %v327 = vld [vmem:[%s324 + $0x10] sm:$0xff]
      %v328 = vld [vmem:[%s324 + $0x18] sm:$0xff]
      %v329 = vld [vmem:[%s324 + $0x20] sm:$0xff]
      %v330 = vld [vmem:[%s324 + $0x28] sm:$0xff]
      %v331 = vld [vmem:[%s324 + $0x30] sm:$0xff]
      %v332 = vld [vmem:[%s324 + $0x38] sm:$0xff]
      %v333 = vlaneseq
      %v334 = vshrl.u32 %v333, 7
      %v335 = vsub.s32 0, %v334
      %v336 = vrot.slane %v226, %v335
      %337 = vmatprep.subr.mxu0 0.0
      %338 = vmatpush1.msra.mxu0 %v325
      %339 = vmatprep.subr.mxu0 0.0
      %340 = vmatpush1.msra.mxu0 %v326
      %341 = vmatprep.subr.mxu0 0.0
      %342 = vmatpush1.msra.mxu0 %v327
      %343 = vmatprep.subr.mxu0 0.0
      %344 = vmatpush1.msra.mxu0 %v328
      %345 = vmatprep.subr.mxu0 0.0
      %346 = vmatpush1.msra.mxu0 %v329
      %347 = vmatprep.subr.mxu0 0.0
      %348 = vmatpush1.msra.mxu0 %v330
      %349 = vmatprep.subr.mxu0 0.0
      %350 = vmatpush1.msra.mxu0 %v331
      %351 = vmatprep.subr.mxu0 0.0
      %352 = vmatpush1.msra.mxu0 %v332
      %353 = vmatprep.subr.mxu0 0.0
      %354 = vmatpush1.msra.mxu0 0.0
      %355 = vmatprep.subr.mxu0 0.0
      %356 = vmatpush1.msra.mxu0 0.0
      %357 = vmatprep.subr.mxu0 0.0
      %358 = vmatpush1.msra.mxu0 0.0
      %359 = vmatprep.subr.mxu0 0.0
      %360 = vmatpush1.msra.mxu0 0.0
      %361 = vmatprep.subr.mxu0 0.0
      %362 = vmatpush1.msra.mxu0 0.0
      %363 = vmatprep.subr.mxu0 0.0
      %364 = vmatpush1.msra.mxu0 0.0
      %365 = vmatprep.subr.mxu0 0.0
      %366 = vmatpush1.msra.mxu0 0.0
      %367 = vmatprep.subr.mxu0 0.0
      %368 = vmatpush1.msra.mxu0 0.0
      %369 = vmatprep.subr.mxu0 0.0
      %370 = vmatpush1.msra.mxu0 0.0
      %371 = vmatprep.subr.mxu0 0.0
      %372 = vmatpush1.msra.mxu0 0.0
      %373 = vmatprep.subr.mxu0 0.0
      %374 = vmatpush1.msra.mxu0 0.0
      %375 = vmatprep.subr.mxu0 0.0
      %376 = vmatpush1.msra.mxu0 0.0
      %377 = vmatprep.subr.mxu0 0.0
      %378 = vmatpush1.msra.mxu0 0.0
      %379 = vmatprep.subr.mxu0 0.0
      %380 = vmatpush1.msra.mxu0 0.0
      %381 = vmatprep.subr.mxu0 0.0
      %382 = vmatpush1.msra.mxu0 0.0
      %383 = vmatprep.subr.mxu0 0.0
      %384 = vmatpush1.msra.mxu0 0.0
      %385 = vmatprep.subr.mxu0 0.0
      %386 = vmatpush1.msra.mxu0 0.0
      %387 = vmatprep.subr.mxu0 0.0
      %388 = vmatpush1.msra.mxu0 0.0
      %389 = vmatprep.subr.mxu0 0.0
      %390 = vmatpush1.msra.mxu0 0.0
      %391 = vmatprep.subr.mxu0 0.0
      %392 = vmatpush1.msra.mxu0 0.0
      %393 = vmatprep.subr.mxu0 0.0
      %394 = vmatpush1.msra.mxu0 0.0
      %395 = vmatprep.subr.mxu0 0.0
      %396 = vmatpush1.msra.mxu0 0.0
      %397 = vmatprep.subr.mxu0 0.0
      %398 = vmatpush1.msra.mxu0 0.0
      %399 = vmatprep.subr.mxu0 0.0
      %400 = vmatpush1.msra.mxu0 0.0
      %401 = vmatprep.mubr.f32.mxu0 0.0
      %402 = vmatmul.mubr.f32.gmra.mrb[0].mxu0 %v252
      %v403 = vpop.f32.mrb[0].mxu0
      %v404 = vadd.f32 %v336, %v403
      %v405 = vpop.f32.mrb[0].mxu0
      %406 = vdwg.mxu0
      %v407 = vmul.f32 %v236, %v321
      %v408 = vadd.f32 %v407, %v404
      %409 = vst [vmem:[%s209] sm:$0xff] %v408
      %p410 = scmp.lt.s32.totalorder %s15, 1
      %s411 = scalar_select %p410, %s15, 1
      %s412 = smul.addr %s411, 8
      %s413 = scalar_lea.vmem %s4, %s412
      // Predicated region
      $region37: #{ada_layernorm.1} parent=35 // pred_check
        %p414 = pneg %p127
      $region38: #{ada_layernorm.1} parent=35 // pred_check_branch
        %416 = sbr.rel (%p414) target = $region40
      $region39: #{ada_layernorm.1} parent=35 // pred_region
        _
      $region40: #{ada_layernorm.1} parent=35 // pred_fallthru
        _
    $region36: #{ada_layernorm.1} parent=5 // pred_fallthru
      _
    %p417 = scmp.le.s32.totalorder 2, %s10
    // Predicated region
    $region41: #{ada_layernorm.1} parent=5 // pred_check
      %p418 = pneg %p417
    $region42: #{ada_layernorm.1} parent=5 // pred_check_branch
      %420 = sbr.rel (%p418) target = $region44
    $region43: #{ada_layernorm.1} parent=5 // pred_region
      %s421 = ssub.s32 %s10, 2
      // Predicated region
      $region45: #{ada_layernorm.1} parent=43 // pred_check
        %p422 = pneg %p133
      $region46: #{ada_layernorm.1} parent=43 // pred_check_branch
        %424 = sbr.rel (%p422) target = $region48
      $region47: #{ada_layernorm.1} parent=43 // pred_region
        %p425 = scmp.lt.s32.totalorder %s16, 1
        %s426 = scalar_select %p425, %s16, 1
        %s427 = smul.addr %s426, 8
        %s428 = scalar_lea.vmem %s4, %s427
      $region48: #{ada_layernorm.1} parent=43 // pred_fallthru
        _
    $region44: #{ada_layernorm.1} parent=5 // pred_fallthru
      _
  $region6: #{ada_layernorm.1} parent=0 // loop_footer
    %s14 = sadd.s32 1, %s10
  $region7: #{ada_layernorm.1} parent=0 // loop_footer_branch
    %9 = sbr.rel target = $region3
  $region8: #{ada_layernorm.1} parent=0 // loop_exit
    _

</llo_original>
